<compile_context>
chip_gen: v7x
topology: tpu7x:2x2x1
jax: 0.10.0
libtpu: 0.0.40
codegen_flags: <defaults>
</compile_context>

<pallas_src>
import functools

import jax
import jax.numpy as jnp
from jax.experimental import pallas as pl
from jax.experimental.pallas import tpu as pltpu

_IGNORE_INDEX = -100  # PyTorch nn.CrossEntropyLoss default


def _round_up(x, m):
    return (x + m - 1) // m * m


def _vmem_capacity_bytes():
    """Per-core VMEM capacity for generation-gated tiling (conservative fallback)."""
    try:
        return int(pltpu.get_tpu_info().vmem_capacity_bytes)
    except Exception:
        return 64 * 1024 * 1024  # v7x per-TensorCore VMEM (smallest across v5e/v6e/v7x)


def _xent_kernel(logits_ref, targets_ref, out_ref, *, num_rows, tile_n, ignore_index):
    """One batch tile of mean-cross-entropy partials.

    logits_ref : VMEM [tile_n, C]  (f32 or bf16; classes UNPADDED)
    targets_ref: VMEM [tile_n, 1]  int32
    out_ref    : VMEM [1, 8, 128]  f32; sublane 0 = partial loss sum,
                                        sublane 1 = partial valid-row count.
    Rows of the trailing partial tile (global index >= num_rows) hold stale
    VMEM data; they are masked out via the global row index, so no wrapper-side
    padding of logits or targets is needed.
    """
    x = logits_ref[...].astype(jnp.float32)             # (tile_n, C)
    t = targets_ref[...]                                 # (tile_n, 1) int32

    row = jax.lax.broadcasted_iota(jnp.int32, t.shape, 0)
    in_range = (pl.program_id(0) * tile_n + row) < num_rows
    valid = jnp.logical_and(in_range, t != ignore_index)  # (tile_n, 1)

    # Numerically stable log-sum-exp over the (unpadded) class axis.
    m = jnp.max(x, axis=-1, keepdims=True)                                # (tile_n, 1)
    lse = jnp.log(jnp.sum(jnp.exp(x - m), axis=-1, keepdims=True)) + m    # (tile_n, 1)

    # Target-logit gather via one-hot compare + lane reduce (VPU/XLU have slack
    # relative to the DMA/EUP bottleneck).
    col = jax.lax.broadcasted_iota(jnp.int32, x.shape, 1)                 # (tile_n, C)
    tgt_logit = jnp.sum(jnp.where(col == t, x, 0.0), axis=-1, keepdims=True)

    # where() squashes any NaN/garbage from masked (stale / ignored) rows.
    per_example = jnp.where(valid, lse - tgt_logit, 0.0)
    psum = jnp.sum(per_example)
    pcnt = jnp.sum(jnp.where(valid, 1.0, 0.0))

    # Pack both partials into a single lane-dense (8,128) block: one vst/step.
    sub = jax.lax.broadcasted_iota(jnp.int32, out_ref.shape, 1)
    out_ref[...] = jnp.where(sub == 0, psum, jnp.where(sub == 1, pcnt, 0.0))


def cross_entropy_pallas(logits, targets, ignore_index=_IGNORE_INDEX,
                         _max_tile_rows=None):
    """logits: [N, C] float (f32 or bf16), targets: [N] int -> scalar f32 mean CE.

    `_max_tile_rows` is a test-only override to force the multi-tile /
    trailing-partial code path at small shapes.
    """
    n, c = logits.shape
    itemsize = jnp.dtype(logits.dtype).itemsize

    # --- generation-gated VMEM budget & tile size ----------------------------
    vmem_cap = _vmem_capacity_bytes()                    # 64 MiB v7x, 128 MiB v5e/v6e
    vmem_limit = min(vmem_cap // 2, 64 * 1024 * 1024)    # 32 MiB v7x, 64 MiB v5e/v6e
    c_lanes = _round_up(c, 128)                          # physical lane width of a row
    row_align = max(8, 32 // itemsize)                   # f32: 8, bf16: 16, int8/fp8: 32
    # Per-row VMEM: double-buffered logits tile + ~3 full-width f32/i32
    # temporaries the body may materialize (f32 upcast, exp, one-hot select)
    # + lane-padded int32 targets (double-buffered).
    per_row = 2 * c_lanes * itemsize + 3 * c_lanes * 4 + 2 * 512
    budget = (vmem_limit * 3) // 4                       # headroom for outputs/scratch
    max_rows = max(row_align, (budget // per_row) // row_align * row_align)
    tile_cap = min(4096, max_rows)
    if _max_tile_rows is not None:                       # test hook only
        tile_cap = max(row_align,
                       (min(tile_cap, int(_max_tile_rows)) // row_align) * row_align)
    # A full-array block (tile_n == n) is always legal regardless of alignment;
    # otherwise tile_n is a multiple of row_align and the trailing partial tile
    # is masked in-kernel.
    tile_n = n if n <= tile_cap else tile_cap
    num_tiles = (n + tile_n - 1) // tile_n

    targets2d = targets.astype(jnp.int32).reshape(n, 1)

    kernel = functools.partial(_xent_kernel, num_rows=n, tile_n=tile_n,
                               ignore_index=ignore_index)

    bytes_accessed = n * c * itemsize + n * 4 + num_tiles * 8 * 128 * 4

    partials = pl.pallas_call(
        kernel,
        grid=(num_tiles,),
        out_shape=jax.ShapeDtypeStruct((num_tiles, 8, 128), jnp.float32),
        in_specs=[
            # Unpadded logits: last block dim == C (full array dim) is legal even
            # when C % 128 != 0 -> no jnp.pad, no extra HBM round trip.
            pl.BlockSpec((tile_n, c), lambda i: (i, 0)),
            pl.BlockSpec((tile_n, 1), lambda i: (i, 0)),
        ],
        out_specs=pl.BlockSpec((1, 8, 128), lambda i: (i, 0, 0)),
        compiler_params=pltpu.CompilerParams(
            dimension_semantics=("parallel",),           # 2-TC split on v7x
            vmem_limit_bytes=int(vmem_limit),            # explicit, generation-gated
        ),
        cost_estimate=pl.CostEstimate(
            flops=5 * n * c,
            transcendentals=n * c + n,                   # exp per element + log per row
            bytes_accessed=int(bytes_accessed),
        ),
    )(logits, targets2d)

    total = jnp.sum(partials[:, 0, 0])
    count = jnp.sum(partials[:, 1, 0])
    # PyTorch 'mean' reduction over non-ignored rows (0/0 -> NaN, like torch).
    return total / count


class TreeSupLossPallas:
    """JAX/Pallas port of nbdt TreeSupLoss (base class) forward semantics."""

    def __init__(self,
                 num_classes,
                 tree_supervision_weight=1.0,
                 tree_supervision_weight_end=None,
                 tree_supervision_weight_power=1,
                 xent_weight=1.0,
                 xent_weight_end=None,
                 xent_weight_power=1,
                 focal_gamma=0):
        self.num_classes = num_classes
        self.tree_supervision_weight = tree_supervision_weight
        self.tree_supervision_weight_end = (
            tree_supervision_weight_end
            if tree_supervision_weight_end is not None
            else tree_supervision_weight)
        self.tree_supervision_weight_power = tree_supervision_weight_power
        self.xent_weight = xent_weight
        self.xent_weight_end = (
            xent_weight_end if xent_weight_end is not None else xent_weight)
        self.xent_weight_power = xent_weight_power
        # focal_gamma accepted for API parity; the default criterion in the
        # reference module is plain CrossEntropyLoss, so it is unused here.
        self.focal_gamma = focal_gamma
        self.progress = 1.0
        self.epochs = 0

    @staticmethod
    def assert_output_not_nbdt(outputs):
        assert getattr(outputs, "_nbdt_output_flag", False) is False, (
            "Looks like you passed an NBDT model's output to an NBDT loss.")

    def set_epoch(self, cur, total):
        self.epochs = cur
        self.progress = cur / total

    def get_weight(self, start, end, power=1):
        progress = self.progress ** power
        return (1 - progress) * start + progress * end

    def forward_tree(self, outputs, targets, features=None, prototypes=None):
        # TODO(synk): forward_tree is abstract (NotImplementedError) in the base
        # TreeSupLoss; concrete subclasses need a WordNet hierarchy, so the
        # base-class contribution is 0 here.
        return jnp.float32(0.0)

    def forward(self, outputs, targets, features=None, prototypes=None):
        loss_xent = cross_entropy_pallas(outputs, targets)
        loss_tree = self.forward_tree(outputs, targets, features, prototypes)
        tree_weight = self.get_weight(self.tree_supervision_weight,
                                      self.tree_supervision_weight_end,
                                      self.tree_supervision_weight_power)
        xent_weight = self.get_weight(self.xent_weight,
                                      self.xent_weight_end,
                                      self.xent_weight_power)
        return loss_xent * xent_weight + loss_tree * tree_weight

    __call__ = forward


def _reference_ce(logits, targets):
    logits = logits.astype(jnp.float32)
    lse = jax.nn.logsumexp(logits, axis=-1)
    tgt = logits[jnp.arange(logits.shape[0]), targets]
    return jnp.mean(lse - tgt)


if __name__ == "__main__":
    key = jax.random.PRNGKey(0)
    k1, k2, k3, k4 = jax.random.split(key, 4)

    # --- main test: f32, aligned batch -------------------------------------
    N, C = 8, 16
    logits = jax.random.normal(k1, (N, C), dtype=jnp.float32)
    targets = jax.random.randint(k2, (N,), 0, C, dtype=jnp.int32)

    loss_mod = TreeSupLossPallas(num_classes=C,
                                 tree_supervision_weight=1.0,
                                 xent_weight=1.0)
    loss_mod.set_epoch(3, 10)  # progress = 0.3, exercises get_weight

    loss = jax.block_until_ready(loss_mod(logits, targets))
    ref = _reference_ce(logits, targets)
    assert jnp.allclose(loss, ref, rtol=1e-5, atol=1e-5), (loss, ref)

    # --- ragged batch / non-128 classes + bf16 logits -----------------------
    N2, C2 = 10, 20
    logits2 = jax.random.normal(k3, (N2, C2), dtype=jnp.float32)
    targets2 = jax.random.randint(k4, (N2,), 0, C2, dtype=jnp.int32)

    loss2 = jax.block_until_ready(cross_entropy_pallas(logits2, targets2))
    ref2 = _reference_ce(logits2, targets2)
    assert jnp.allclose(loss2, ref2, rtol=1e-5, atol=1e-5), (loss2, ref2)

    loss2_bf16 = jax.block_until_ready(
        cross_entropy_pallas(logits2.astype(jnp.bfloat16), targets2))
    assert jnp.allclose(loss2_bf16, ref2, rtol=2e-2, atol=2e-2), (loss2_bf16, ref2)

    # --- multi-tile / trailing-partial row-mask path (forced small tiles) ---
    loss3 = jax.block_until_ready(
        cross_entropy_pallas(logits2, targets2, _max_tile_rows=8))
    assert jnp.allclose(loss3, ref2, rtol=1e-5, atol=1e-5), (loss3, ref2)

    # --- ignore_index path ---------------------------------------------------
    targets_ig = targets2.at[3].set(_IGNORE_INDEX)
    mask = targets_ig != _IGNORE_INDEX
    lse_ref = jax.nn.logsumexp(logits2, axis=-1)
    tgt_ref = logits2[jnp.arange(N2), jnp.where(mask, targets_ig, 0)]
    ref_ig = jnp.sum(jnp.where(mask, lse_ref - tgt_ref, 0.0)) / jnp.sum(mask)
    loss_ig = jax.block_until_ready(cross_entropy_pallas(logits2, targets_ig))
    assert jnp.allclose(loss_ig, ref_ig, rtol=1e-5, atol=1e-5), (loss_ig, ref_ig)

    print("KERNEL_OK")
</pallas_src>

<mosaic_0001>
module attributes {stable_mosaic.version = 11 : i64} {
  func.func @_xent_kernel(%arg0: i32, %arg1: memref<8x16xf32, #tpu.memory_space<vmem>>, %arg2: memref<8x1xi32, #tpu.memory_space<vmem>>, %arg3: memref<1x8x128xf32, #tpu.memory_space<vmem>>) attributes {dimension_semantics = [#tpu.dimension_semantics<parallel>], iteration_bounds = array<i64: 1>, scalar_prefetch = 0 : i64, scratch_operands = 0 : i64, tpu.core_type = #tpu.core_type<tc>, window_params = [{transform_indices = @transform_0, window_bounds = array<i64: 8, 16>}, {transform_indices = @transform_1, window_bounds = array<i64: 8, 1>}, {transform_indices = @transform_2, window_bounds = array<i64: 1, 8, 128>}]} {
    %c0 = arith.constant 0 : index
    %c0_0 = arith.constant 0 : index
    %0 = vector.load %arg1[%c0, %c0_0] : memref<8x16xf32, #tpu.memory_space<vmem>>, vector<8x16xf32>
    %c0_1 = arith.constant 0 : index
    %c0_2 = arith.constant 0 : index
    %1 = vector.load %arg2[%c0_1, %c0_2] : memref<8x1xi32, #tpu.memory_space<vmem>>, vector<8x1xi32>
    %2 = tpu.iota {dimensions = array<i32: 0>} : vector<8x1xi32>
    %c8_i32 = arith.constant 8 : i32
    %3 = arith.muli %arg0, %c8_i32 : i32
    %4 = vector.broadcast %3 : i32 to vector<8x1xi32>
    %5 = arith.addi %4, %2 : vector<8x1xi32>
    %c8_i32_3 = arith.constant 8 : i32
    %6 = vector.broadcast %c8_i32_3 : i32 to vector<8x1xi32>
    %7 = arith.cmpi slt, %5, %6 : vector<8x1xi32>
    %c-100_i32 = arith.constant -100 : i32
    %8 = vector.broadcast %c-100_i32 : i32 to vector<8x1xi32>
    %9 = arith.cmpi ne, %1, %8 : vector<8x1xi32>
    %10 = arith.andi %7, %9 : vector<8x1xi1>
    %cst = arith.constant dense<0xFF800000> : vector<8xf32>
    %11 = vector.multi_reduction <maximumf>, %0, %cst [1] : vector<8x16xf32> to vector<8xf32>
    %12 = vector.shape_cast %11 : vector<8xf32> to vector<8x1xf32>
    %13 = vector.broadcast %12 : vector<8x1xf32> to vector<8x16xf32>
    %14 = arith.subf %0, %13 : vector<8x16xf32>
    %15 = math.exp %14 : vector<8x16xf32>
    %cst_4 = arith.constant dense<0.000000e+00> : vector<8xf32>
    %16 = vector.multi_reduction <add>, %15, %cst_4 [1] : vector<8x16xf32> to vector<8xf32>
    %17 = vector.shape_cast %16 : vector<8xf32> to vector<8x1xf32>
    %18 = math.log %17 : vector<8x1xf32>
    %19 = arith.addf %18, %12 : vector<8x1xf32>
    %20 = tpu.iota {dimensions = array<i32: 1>} : vector<8x16xi32>
    %21 = vector.broadcast %1 : vector<8x1xi32> to vector<8x16xi32>
    %22 = arith.cmpi eq, %20, %21 : vector<8x16xi32>
    %cst_5 = arith.constant 0.000000e+00 : f32
    %23 = vector.broadcast %cst_5 : f32 to vector<8x16xf32>
    %24 = arith.select %22, %0, %23 : vector<8x16xi1>, vector<8x16xf32>
    %cst_6 = arith.constant dense<0.000000e+00> : vector<8xf32>
    %25 = vector.multi_reduction <add>, %24, %cst_6 [1] : vector<8x16xf32> to vector<8xf32>
    %26 = vector.shape_cast %25 : vector<8xf32> to vector<8x1xf32>
    %27 = arith.subf %19, %26 : vector<8x1xf32>
    %cst_7 = arith.constant 0.000000e+00 : f32
    %28 = vector.broadcast %cst_7 : f32 to vector<8x1xf32>
    %29 = arith.select %10, %27, %28 : vector<8x1xi1>, vector<8x1xf32>
    %30 = vector.shape_cast %29 : vector<8x1xf32> to vector<1x8x1xf32>
    %cst_8 = arith.constant dense<0.000000e+00> : vector<1xf32>
    %31 = vector.multi_reduction <add>, %30, %cst_8 [1, 2] : vector<1x8x1xf32> to vector<1xf32>
    %32 = vector.shape_cast %31 : vector<1xf32> to vector<1x1x1xf32>
    %33 = vector.extract %32[0, 0, 0] : f32 from vector<1x1x1xf32>
    %cst_9 = arith.constant 1.000000e+00 : f32
    %cst_10 = arith.constant 0.000000e+00 : f32
    %34 = vector.broadcast %cst_9 : f32 to vector<8x1xf32>
    %35 = vector.broadcast %cst_10 : f32 to vector<8x1xf32>
    %36 = arith.select %10, %34, %35 : vector<8x1xi1>, vector<8x1xf32>
    %37 = vector.shape_cast %36 : vector<8x1xf32> to vector<1x8x1xf32>
    %cst_11 = arith.constant dense<0.000000e+00> : vector<1xf32>
    %38 = vector.multi_reduction <add>, %37, %cst_11 [1, 2] : vector<1x8x1xf32> to vector<1xf32>
    %39 = vector.shape_cast %38 : vector<1xf32> to vector<1x1x1xf32>
    %40 = vector.extract %39[0, 0, 0] : f32 from vector<1x1x1xf32>
    %41 = tpu.iota {dimensions = array<i32: 1>} : vector<1x8x128xi32>
    %c0_i32 = arith.constant 0 : i32
    %42 = vector.broadcast %c0_i32 : i32 to vector<1x8x128xi32>
    %43 = arith.cmpi eq, %41, %42 : vector<1x8x128xi32>
    %c1_i32 = arith.constant 1 : i32
    %44 = vector.broadcast %c1_i32 : i32 to vector<1x8x128xi32>
    %45 = arith.cmpi eq, %41, %44 : vector<1x8x128xi32>
    %cst_12 = arith.constant 0.000000e+00 : f32
    %46 = vector.broadcast %40 : f32 to vector<1x8x128xf32>
    %47 = vector.broadcast %cst_12 : f32 to vector<1x8x128xf32>
    %48 = arith.select %45, %46, %47 : vector<1x8x128xi1>, vector<1x8x128xf32>
    %49 = vector.broadcast %33 : f32 to vector<1x8x128xf32>
    %50 = arith.select %43, %49, %48 : vector<1x8x128xi1>, vector<1x8x128xf32>
    %c0_13 = arith.constant 0 : index
    %c0_14 = arith.constant 0 : index
    %c0_15 = arith.constant 0 : index
    %51 = vector.load %arg3[%c0_13, %c0_14, %c0_15] : memref<1x8x128xf32, #tpu.memory_space<vmem>>, vector<1x8x128xf32>
    tpu.vector_store %arg3[%c0_13, %c0_14, %c0_15], %50 {strides = array<i32>} : memref<1x8x128xf32, #tpu.memory_space<vmem>>, vector<1x8x128xf32>,
    return
  }
  func.func @transform_0(%arg0: i32) -> (i32, i32) {
    %c0_i32 = arith.constant 0 : i32
    %c0_i32_0 = arith.constant 0 : i32
    return %arg0, %c0_i32 : i32, i32
  }
  func.func @transform_1(%arg0: i32) -> (i32, i32) {
    %c0_i32 = arith.constant 0 : i32
    %c0_i32_0 = arith.constant 0 : i32
    return %arg0, %c0_i32 : i32, i32
  }
  func.func @transform_2(%arg0: i32) -> (i32, i32, i32) {
    %c0_i32 = arith.constant 0 : i32
    %c0_i32_0 = arith.constant 0 : i32
    %c0_i32_1 = arith.constant 0 : i32
    return %arg0, %c0_i32, %c0_i32_0 : i32, i32, i32
  }
}

</mosaic_0001>

<llo_original>
// kernel: tpu_custom_call.1
$region0: #{tpu_custom_call.1}
  #allocation0 [shape = 'u32[]', space=smem, size = 0x4, offset = 0x4, fixed_abs, tag = 'smem constant byte address 0x4 - core index']
  #allocation1 [shape = 'u32[144,128]{1,0:T(1,128)}', space=vmem, size = 0x12000, scoped, tag = 'internal scratch']
  %s0 = inlined_call_operand.vmem [shape: f32[8,16], index: 0, kind: input, shape index: {}]
  %s1 = inlined_call_operand.vmem [shape: s32[8,1], index: 1, kind: input, shape index: {}]
  %s2 = inlined_call_operand.hbm [shape: f32[1,8,128], index: 2, kind: output, shape index: {}]
  %s3 = sld [smem:[#allocation0]]
  $region18: #{tpu_custom_call.1} parent=0
    _
  %s5 = ssub.s32 1, %s3
  %s6 = scalar_select 0, %s5, %s3
  $region1: #{tpu_custom_call.1} parent=0
    #allocation2 [shape = 'u8[4096]{0}', space=vmem, size = 0x1000, scoped, tag = 'output window, operand 0, single buffered']
    #allocation3 [shape = 's32[1]{0}', space=sflag, size = 0x4, scoped, tag = 'scoped memory for tpu_custom_call.1']
    %7 = vsyncpa [#allocation3], 0
    // Predicated region
    $region2: #{tpu_custom_call.1} parent=1 // pred_check
      _
    $region3: #{tpu_custom_call.1} parent=1 // pred_check_branch
      %9 = sbr.rel (0) target = $region5
    $region4: #{tpu_custom_call.1} parent=1 // pred_region
      _
    $region5: #{tpu_custom_call.1} parent=1 // pred_fallthru
      _
    // Predicated region
    $region6: #{tpu_custom_call.1} parent=1 // pred_check
      _
    $region7: #{tpu_custom_call.1} parent=1 // pred_check_branch
      %11 = sbr.rel (0) target = $region9
    $region8: #{tpu_custom_call.1} parent=1 // pred_region
      _
    $region9: #{tpu_custom_call.1} parent=1 // pred_fallthru
      _
    %v12 = vld [vmem:[%s0] sm:$0xff]
    %v13 = vld [vmem:[%s1] sm:$0xff]
    %v14 = vlaneseq
    %v15 = vshrl.u32 %v14, 7
    %s16 = smul.u32 0, 8
    %v17 = vstv %s16
    %v18 = vadd.s32 %v17, %v15
    %vm19 = vcmp.lt.s32.totalorder %v18, 8
    %vm20 = vcmp.ne.s32.totalorder %v13, 4294967196
    %vm21 = vmand %vm19, %vm20
    %vm22 = vcmask 130048
    %v23 = vsel %vm22, %v12, -inf
    %24 = vmax.xlane.f32.xlu0 %v23
    %v25 = vpop.xlane.xlu0 %24
    %v26 = vsub.f32 %v12, %v25
    %v27 = vmul.f32 %v26, 1.442695
    %v28 = vpow.pop %v27
    %v29 = vsel %vm22, %v28, 0.0
    %30 = vadd.xlane.f32.xlu0 %v29
    %v31 = vpop.xlane.xlu0 %30
    %v32 = vlog2.pop %v31
    %v33 = vmul.f32 %v32, 0.6931472
    %v34 = vadd.f32 %v33, %v25
    %v35 = vlaneseq
    %v36 = vand.u32 %v35, 127
    %37 = vset.pattern.permute.xlu0 0
    %38 = vperm.xlu0 %37, %v13
    %v39 = vpop.permute.xlu0 %38
    %vm40 = vcmp.eq.s32.totalorder %v36, %v39
    %v41 = vsel %vm40, %v12, 0.0
    %v42 = vsel %vm22, %v41, 0.0
    %43 = vadd.xlane.f32.xlu0 %v42
    %v44 = vpop.xlane.xlu0 %43
    %v45 = vsub.f32 %v34, %v44
    %v46 = vsel %vm21, %v45, 0.0
    %vm47 = vcmask 7168
    %v48 = vsel %vm47, %v46, 0.0
    %49 = vadd.xlane.f32.xlu0 %v48
    %v50 = vpop.xlane.xlu0 %49
    %v51 = vrot.slane %v50, 4
    %v52 = vadd.f32 %v50, %v51
    %v53 = vrot.slane %v52, 2
    %v54 = vadd.f32 %v52, %v53
    %v55 = vrot.slane %v54, 1
    %v56 = vadd.f32 %v54, %v55
    %s57 = vtos %v56
    %v58 = vsel %vm21, 1.0, 0.0
    %v59 = vsel %vm47, %v58, 0.0
    %60 = vadd.xlane.f32.xlu0 %v59
    %v61 = vpop.xlane.xlu0 %60
    %v62 = vrot.slane %v61, 4
    %v63 = vadd.f32 %v61, %v62
    %v64 = vrot.slane %v63, 2
    %v65 = vadd.f32 %v63, %v64
    %v66 = vrot.slane %v65, 1
    %v67 = vadd.f32 %v65, %v66
    %s68 = vtos %v67
    %vm69 = vcmp.eq.s32.totalorder %v15, 0
    %vm70 = vcmp.eq.s32.totalorder %v15, 1
    %v71 = vstv %s68
    %v72 = vsel %vm70, %v71, 0.0
    %v73 = vstv %s57
    %v74 = vsel %vm69, %v73, %v72
    %75 = vst [vmem:[#allocation2] sm:$0xff] %v74
    // Predicated region
    $region10: #{tpu_custom_call.1} parent=1 // pred_check
      _
    $region11: #{tpu_custom_call.1} parent=1 // pred_check_branch
      %77 = sbr.rel (0) target = $region13
    $region12: #{tpu_custom_call.1} parent=1 // pred_region
      %s79 = ssub.s32 128, 128
      %80 = vsyncadd [#allocation3], %s79
      %s82 = sshll.u32 [#allocation2], 4
      %s83 = int_to_ptr.vmem [resolvable:$true] %s82
      %85 = dma.vmem_to_hbm [thread:$0]  %s83, 128, %s2, [#allocation3]
    $region13: #{tpu_custom_call.1} parent=1 // pred_fallthru
      _
    // Predicated region
    $region14: #{tpu_custom_call.1} parent=1 // pred_check
      _
    $region15: #{tpu_custom_call.1} parent=1 // pred_check_branch
      %87 = sbr.rel (0) target = $region17
    $region16: #{tpu_custom_call.1} parent=1 // pred_region
      %88 = dma.done [#allocation3], 128
    $region17: #{tpu_custom_call.1} parent=1 // pred_fallthru
      _
    %89 = vsyncpa [#allocation3], 1

</llo_original>
